<compile_context>
chip_gen: v7x
topology: tpu7x:2x2x1
jax: 0.10.0
libtpu: 0.0.40
codegen_flags: <defaults>
</compile_context>

<pallas_src>
import functools

import jax
import jax.numpy as jnp
from jax.experimental import pallas as pl
from jax.experimental.pallas import tpu as pltpu


def _round_up(x, m):
    return ((x + m - 1) // m) * m


def _max_tile_b():
    """256 rows to fill the 2x256^2 MXU on v6e/v7x; 128 is enough on v5-class."""
    try:
        kind = jax.devices()[0].device_kind.lower()
        if "v5" in kind or "v4" in kind:
            return 128
    except Exception:  # pragma: no cover - device query is best-effort
        pass
    return 256


def _choose_tile_v(v_all, ep, tile_b, budget_bytes=20 * 1024 * 1024):
    """Columns of the (Ep, tile_v) bf16 vocab tile.

    Budget: 2x double-buffered bf16 vocab tiles  (2 * ep * tile_v * 2 B)
          + ~3 f32 (tile_b, tile_v) temporaries  (scores / exp / mask)
    kept ~20 MiB so the kernel fits v7x's 64 MiB physical VMEM with headroom
    (and trivially v5e/v6e's 128 MiB)."""
    bytes_per_col = 2 * ep * 2 + 3 * tile_b * 4
    max_cols = max(128, budget_bytes // bytes_per_col)
    tile = max(128, (max_cols // 128) * 128)
    tile = min(tile, 4096)                        # bound padding waste
    return min(tile, _round_up(v_all, 128))       # never larger than the table


def _pad2(x, rows, cols):
    if rows == 0 and cols == 0:
        return x
    return jnp.pad(x, ((0, rows), (0, cols)))


def skipgram_denom_kernel(center_ref, voc_ref, out_ref, m_sc, s_sc,
                          *, v_actual, tile_v, needs_mask):
    """Grid = (B tiles, V tiles). Accumulates log(sum_v exp(<voc_v, center_b>))
    per batch row with an online (flash-style) log-sum-exp across the V axis."""
    k = pl.program_id(1)
    last = pl.num_programs(1) - 1

    @pl.when(k == 0)
    def _init():
        m_sc[...] = jnp.full_like(m_sc, -jnp.inf)
        s_sc[...] = jnp.zeros_like(s_sc)

    # (TILE_B, Ep) @ (Ep, tile_v) -> (TILE_B, tile_v) on the MXU, f32 acc.
    # Vocab operand is pre-transposed in the wrapper: no in-kernel transpose.
    scores = jnp.dot(center_ref[...], voc_ref[...],
                     preferred_element_type=jnp.float32)

    def _lse_update(sc):
        m_prev = m_sc[...]                                    # (TILE_B, 1)
        m_new = jnp.maximum(m_prev, jnp.max(sc, axis=-1, keepdims=True))
        s_sc[...] = (s_sc[...] * jnp.exp(m_prev - m_new)
                     + jnp.sum(jnp.exp(sc - m_new), axis=-1, keepdims=True))
        m_sc[...] = m_new

    if needs_mask:
        # Padding only ever lives in the final V tile: mask there, nowhere else.
        @pl.when(k != last)
        def _full_tile():
            _lse_update(scores)

        @pl.when(k == last)
        def _padded_tile():
            col = jax.lax.broadcasted_iota(jnp.int32, scores.shape, 1) + k * tile_v
            _lse_update(jnp.where(col < v_actual, scores, -jnp.inf))
    else:
        _lse_update(scores)

    @pl.when(k == last)
    def _emit():
        logdenom = m_sc[...] + jnp.log(s_sc[...])             # (TILE_B, 1)
        # Lane-dense unmasked store; wrapper reads column 0.
        out_ref[...] = jnp.broadcast_to(logdenom, out_ref.shape)


def skipgram_loss(emb_center, emb_outside, center, outside, all_vocabs):
    """Pallas implementation of Skipgram.forward.

    emb_center, emb_outside: (V, E) float32 embedding tables
    center, outside: (B, 1) int32 indices
    all_vocabs: (B, V_all) int32 indices (full vocab tiled per batch row)
    """
    B = center.shape[0]
    E = emb_center.shape[1]
    V_all = all_vocabs.shape[1]

    # Embedding lookups (gather) — plain JAX glue, cast fused into the gather.
    center_e = emb_center[center[:, 0]].astype(jnp.bfloat16)   # (B, E)
    outside_e = emb_outside[outside[:, 0]]                      # (B, E) f32

    # top term: log(top_b) = <outside_b, center_b>; only B*E work, keep in JAX (f32).
    log_top = jnp.sum(emb_center[center[:, 0]] * outside_e, axis=-1)   # (B,)

    # Shared vocab operand: avoid materializing the (B, V, E) gather.
    # TODO(synk): if all_vocabs rows ever differ per batch, fall back to a per-row gather.
    voc_t = emb_outside[all_vocabs[0]].astype(jnp.bfloat16).T   # (E, V_all) bf16

    # Tiling: TILE_B up to 256 (128 on v5-class), lane dim E padded to 128,
    # vocab tile budgeted against VMEM incl. f32 score temporaries.
    Ep = _round_up(E, 128)
    TILE_B = min(_max_tile_b(), _round_up(B, 16))
    Bp = _round_up(B, TILE_B)
    tile_v = _choose_tile_v(V_all, Ep, TILE_B)
    Vp = _round_up(V_all, tile_v)
    needs_mask = (Vp != V_all)

    center_p = _pad2(center_e, Bp - B, Ep - E)                  # (Bp, Ep) bf16
    voc_p = _pad2(voc_t, Ep - E, Vp - V_all)                    # (Ep, Vp) bf16

    grid_b = Bp // TILE_B
    grid_v = Vp // tile_v
    # Vocab is streamed once total when resident (grid_v == 1, constant block
    # index), otherwise once per batch tile.
    voc_streams = 1 if grid_v == 1 else grid_b

    out = pl.pallas_call(
        functools.partial(skipgram_denom_kernel,
                          v_actual=V_all, tile_v=tile_v, needs_mask=needs_mask),
        out_shape=jax.ShapeDtypeStruct((Bp, 128), jnp.float32),
        grid_spec=pltpu.PrefetchScalarGridSpec(
            num_scalar_prefetch=0,
            grid=(grid_b, grid_v),
            in_specs=[
                pl.BlockSpec((TILE_B, Ep), lambda b, k: (b, 0)),
                pl.BlockSpec((Ep, tile_v), lambda b, k: (0, k)),
            ],
            out_specs=pl.BlockSpec((TILE_B, 128), lambda b, k: (b, 0)),
            scratch_shapes=[
                pltpu.VMEM((TILE_B, 1), jnp.float32),   # running max
                pltpu.VMEM((TILE_B, 1), jnp.float32),   # running sum
            ],
        ),
        compiler_params=pltpu.CompilerParams(
            dimension_semantics=("parallel", "arbitrary"),
            vmem_limit_bytes=48 << 20,   # safe on v7x (64 MiB phys), ample on v5e/v6e
        ),
        cost_estimate=pl.CostEstimate(
            flops=2 * Bp * Vp * Ep,
            transcendentals=Bp * Vp,
            bytes_accessed=(voc_streams * Vp * Ep * 2
                            + Bp * Ep * 2
                            + Bp * 128 * 4),
        ),
    )(center_p, voc_p)

    log_denom = out[:B, 0]                                      # (B,)

    # -mean_{i,j} log(top_i / denom_j) == -mean_i log top_i + mean_j log denom_j
    loss = -jnp.mean(log_top) + jnp.mean(log_denom)
    return loss


if __name__ == "__main__":
    voc_size, emb_size, batch = 16, 32, 4

    key = jax.random.PRNGKey(0)
    k_emb_c, k_emb_o, k_center, k_outside = jax.random.split(key, 4)

    # nn.Embedding default init ~ N(0, 1)
    emb_center = jax.random.normal(k_emb_c, (voc_size, emb_size), jnp.float32)
    emb_outside = jax.random.normal(k_emb_o, (voc_size, emb_size), jnp.float32)

    center = jax.random.randint(k_center, (batch, 1), 0, voc_size, dtype=jnp.int32)
    outside = jax.random.randint(k_outside, (batch, 1), 0, voc_size, dtype=jnp.int32)
    all_vocabs = jnp.tile(jnp.arange(voc_size, dtype=jnp.int32)[None, :], (batch, 1))

    loss = skipgram_loss(emb_center, emb_outside, center, outside, all_vocabs)
    jax.block_until_ready(loss)

    # Pure-JAX reference mirroring the PyTorch forward (bf16 MXU operands =>
    # allow ~1e-2 relative slack).
    ce = emb_center[center[:, 0]]
    oe = emb_outside[outside[:, 0]]
    ve = emb_outside[all_vocabs]
    top = jnp.exp(jnp.sum(oe * ce, axis=-1))                    # (B,)
    lower = jnp.einsum('bve,be->bv', ve, ce)                    # (B, V)
    denom = jnp.sum(jnp.exp(lower), axis=1)                     # (B,)
    ref = -jnp.mean(jnp.log(top[:, None] / denom[None, :]))

    assert loss.shape == () and jnp.isfinite(loss)
    assert jnp.allclose(loss, ref, rtol=2e-2, atol=2e-2), (loss, ref)
    print("KERNEL_OK")
</pallas_src>

<mosaic_0001>
module attributes {stable_mosaic.version = 11 : i64} {
  func.func @skipgram_denom_kernel(%arg0: i32, %arg1: i32, %arg2: memref<16x128xbf16, #tpu.memory_space<vmem>>, %arg3: memref<128x128xbf16, #tpu.memory_space<vmem>>, %arg4: memref<16x128xf32, #tpu.memory_space<vmem>>, %arg5: memref<16x1xf32, #tpu.memory_space<vmem>>, %arg6: memref<16x1xf32, #tpu.memory_space<vmem>>) attributes {dimension_semantics = [#tpu.dimension_semantics<parallel>, #tpu.dimension_semantics<arbitrary>], iteration_bounds = array<i64: 1, 1>, scalar_prefetch = 0 : i64, scratch_operands = 2 : i64, tpu.core_type = #tpu.core_type<tc>, window_params = [{transform_indices = @transform_0, window_bounds = array<i64: 16, 128>}, {transform_indices = @transform_1, window_bounds = array<i64: 128, 128>}, {transform_indices = @transform_2, window_bounds = array<i64: 16, 128>}]} {
    %c0_i32 = arith.constant 0 : i32
    %0 = arith.cmpi eq, %arg1, %c0_i32 : i32
    %1 = arith.extui %0 : i1 to i32
    %c0_i32_0 = arith.constant 0 : i32
    %2 = arith.cmpi ne, %1, %c0_i32_0 : i32
    scf.if %2 {
      %cst_10 = arith.constant 0xFF800000 : f32
      %15 = vector.broadcast %cst_10 : f32 to vector<16x1xf32>
      %c0_11 = arith.constant 0 : index
      %c0_12 = arith.constant 0 : index
      %16 = vector.load %arg5[%c0_11, %c0_12] : memref<16x1xf32, #tpu.memory_space<vmem>>, vector<16x1xf32>
      tpu.vector_store %arg5[%c0_11, %c0_12], %15 {strides = array<i32>} : memref<16x1xf32, #tpu.memory_space<vmem>>, vector<16x1xf32>,
      %cst_13 = arith.constant 0.000000e+00 : f32
      %17 = vector.broadcast %cst_13 : f32 to vector<16x1xf32>
      %c0_14 = arith.constant 0 : index
      %c0_15 = arith.constant 0 : index
      %18 = vector.load %arg6[%c0_14, %c0_15] : memref<16x1xf32, #tpu.memory_space<vmem>>, vector<16x1xf32>
      tpu.vector_store %arg6[%c0_14, %c0_15], %17 {strides = array<i32>} : memref<16x1xf32, #tpu.memory_space<vmem>>, vector<16x1xf32>,
    } else {
    }
    %c0 = arith.constant 0 : index
    %c0_1 = arith.constant 0 : index
    %3 = vector.load %arg2[%c0, %c0_1] : memref<16x128xbf16, #tpu.memory_space<vmem>>, vector<16x128xbf16>
    %c0_2 = arith.constant 0 : index
    %c0_3 = arith.constant 0 : index
    %4 = vector.load %arg3[%c0_2, %c0_3] : memref<128x128xbf16, #tpu.memory_space<vmem>>, vector<128x128xbf16>
    %cst = arith.constant dense<0.000000e+00> : vector<16x128xf32>
    %5 = tpu.matmul %3, %4, %cst {dimension_numbers = #tpu.dot_dimension_numbers<[1], [0], [0], [1], [0, 0, 1, 1], [], []>} : vector<16x128xbf16>, vector<128x128xbf16>, vector<16x128xf32> -> vector<16x128xf32>
    %c0_i32_4 = arith.constant 0 : i32
    %6 = arith.cmpi ne, %arg1, %c0_i32_4 : i32
    %7 = arith.extui %6 : i1 to i32
    %c0_i32_5 = arith.constant 0 : i32
    %8 = arith.cmpi ne, %7, %c0_i32_5 : i32
    scf.if %8 {
      %c0_10 = arith.constant 0 : index
      %c0_11 = arith.constant 0 : index
      %15 = vector.load %arg5[%c0_10, %c0_11] : memref<16x1xf32, #tpu.memory_space<vmem>>, vector<16x1xf32>
      %cst_12 = arith.constant dense<0xFF800000> : vector<16xf32>
      %16 = vector.multi_reduction <maximumf>, %5, %cst_12 [1] : vector<16x128xf32> to vector<16xf32>
      %17 = vector.shape_cast %16 : vector<16xf32> to vector<16x1xf32>
      %18 = arith.maximumf %15, %17 : vector<16x1xf32>
      %c0_13 = arith.constant 0 : index
      %c0_14 = arith.constant 0 : index
      %19 = vector.load %arg6[%c0_13, %c0_14] : memref<16x1xf32, #tpu.memory_space<vmem>>, vector<16x1xf32>
      %20 = arith.subf %15, %18 : vector<16x1xf32>
      %21 = math.exp %20 : vector<16x1xf32>
      %22 = arith.mulf %19, %21 : vector<16x1xf32>
      %23 = vector.broadcast %18 : vector<16x1xf32> to vector<16x128xf32>
      %24 = arith.subf %5, %23 : vector<16x128xf32>
      %25 = math.exp %24 : vector<16x128xf32>
      %cst_15 = arith.constant dense<0.000000e+00> : vector<16xf32>
      %26 = vector.multi_reduction <add>, %25, %cst_15 [1] : vector<16x128xf32> to vector<16xf32>
      %27 = vector.shape_cast %26 : vector<16xf32> to vector<16x1xf32>
      %28 = arith.addf %22, %27 : vector<16x1xf32>
      %c0_16 = arith.constant 0 : index
      %c0_17 = arith.constant 0 : index
      %29 = vector.load %arg6[%c0_16, %c0_17] : memref<16x1xf32, #tpu.memory_space<vmem>>, vector<16x1xf32>
      tpu.vector_store %arg6[%c0_16, %c0_17], %28 {strides = array<i32>} : memref<16x1xf32, #tpu.memory_space<vmem>>, vector<16x1xf32>,
      %c0_18 = arith.constant 0 : index
      %c0_19 = arith.constant 0 : index
      %30 = vector.load %arg5[%c0_18, %c0_19] : memref<16x1xf32, #tpu.memory_space<vmem>>, vector<16x1xf32>
      tpu.vector_store %arg5[%c0_18, %c0_19], %18 {strides = array<i32>} : memref<16x1xf32, #tpu.memory_space<vmem>>, vector<16x1xf32>,
    } else {
    }
    %c0_i32_6 = arith.constant 0 : i32
    %9 = arith.cmpi eq, %arg1, %c0_i32_6 : i32
    %10 = arith.extui %9 : i1 to i32
    %c0_i32_7 = arith.constant 0 : i32
    %11 = arith.cmpi ne, %10, %c0_i32_7 : i32
    scf.if %11 {
      %15 = tpu.iota {dimensions = array<i32: 1>} : vector<16x128xi32>
      %c128_i32 = arith.constant 128 : i32
      %16 = arith.muli %arg1, %c128_i32 : i32
      %17 = vector.broadcast %16 : i32 to vector<16x128xi32>
      %18 = arith.addi %15, %17 : vector<16x128xi32>
      %c16_i32 = arith.constant 16 : i32
      %19 = vector.broadcast %c16_i32 : i32 to vector<16x128xi32>
      %20 = arith.cmpi slt, %18, %19 : vector<16x128xi32>
      %cst_10 = arith.constant 0xFF800000 : f32
      %21 = vector.broadcast %cst_10 : f32 to vector<16x128xf32>
      %22 = arith.select %20, %5, %21 : vector<16x128xi1>, vector<16x128xf32>
      %c0_11 = arith.constant 0 : index
      %c0_12 = arith.constant 0 : index
      %23 = vector.load %arg5[%c0_11, %c0_12] : memref<16x1xf32, #tpu.memory_space<vmem>>, vector<16x1xf32>
      %cst_13 = arith.constant dense<0xFF800000> : vector<16xf32>
      %24 = vector.multi_reduction <maximumf>, %22, %cst_13 [1] : vector<16x128xf32> to vector<16xf32>
      %25 = vector.shape_cast %24 : vector<16xf32> to vector<16x1xf32>
      %26 = arith.maximumf %23, %25 : vector<16x1xf32>
      %c0_14 = arith.constant 0 : index
      %c0_15 = arith.constant 0 : index
      %27 = vector.load %arg6[%c0_14, %c0_15] : memref<16x1xf32, #tpu.memory_space<vmem>>, vector<16x1xf32>
      %28 = arith.subf %23, %26 : vector<16x1xf32>
      %29 = math.exp %28 : vector<16x1xf32>
      %30 = arith.mulf %27, %29 : vector<16x1xf32>
      %31 = vector.broadcast %26 : vector<16x1xf32> to vector<16x128xf32>
      %32 = arith.subf %22, %31 : vector<16x128xf32>
      %33 = math.exp %32 : vector<16x128xf32>
      %cst_16 = arith.constant dense<0.000000e+00> : vector<16xf32>
      %34 = vector.multi_reduction <add>, %33, %cst_16 [1] : vector<16x128xf32> to vector<16xf32>
      %35 = vector.shape_cast %34 : vector<16xf32> to vector<16x1xf32>
      %36 = arith.addf %30, %35 : vector<16x1xf32>
      %c0_17 = arith.constant 0 : index
      %c0_18 = arith.constant 0 : index
      %37 = vector.load %arg6[%c0_17, %c0_18] : memref<16x1xf32, #tpu.memory_space<vmem>>, vector<16x1xf32>
      tpu.vector_store %arg6[%c0_17, %c0_18], %36 {strides = array<i32>} : memref<16x1xf32, #tpu.memory_space<vmem>>, vector<16x1xf32>,
      %c0_19 = arith.constant 0 : index
      %c0_20 = arith.constant 0 : index
      %38 = vector.load %arg5[%c0_19, %c0_20] : memref<16x1xf32, #tpu.memory_space<vmem>>, vector<16x1xf32>
      tpu.vector_store %arg5[%c0_19, %c0_20], %26 {strides = array<i32>} : memref<16x1xf32, #tpu.memory_space<vmem>>, vector<16x1xf32>,
    } else {
    }
    %c0_i32_8 = arith.constant 0 : i32
    %12 = arith.cmpi eq, %arg1, %c0_i32_8 : i32
    %13 = arith.extui %12 : i1 to i32
    %c0_i32_9 = arith.constant 0 : i32
    %14 = arith.cmpi ne, %13, %c0_i32_9 : i32
    scf.if %14 {
      %c0_10 = arith.constant 0 : index
      %c0_11 = arith.constant 0 : index
      %15 = vector.load %arg5[%c0_10, %c0_11] : memref<16x1xf32, #tpu.memory_space<vmem>>, vector<16x1xf32>
      %c0_12 = arith.constant 0 : index
      %c0_13 = arith.constant 0 : index
      %16 = vector.load %arg6[%c0_12, %c0_13] : memref<16x1xf32, #tpu.memory_space<vmem>>, vector<16x1xf32>
      %17 = math.log %16 : vector<16x1xf32>
      %18 = arith.addf %15, %17 : vector<16x1xf32>
      %19 = vector.shape_cast %18 : vector<16x1xf32> to vector<16x1xf32>
      %20 = vector.broadcast %19 : vector<16x1xf32> to vector<16x128xf32>
      %c0_14 = arith.constant 0 : index
      %c0_15 = arith.constant 0 : index
      %21 = vector.load %arg4[%c0_14, %c0_15] : memref<16x128xf32, #tpu.memory_space<vmem>>, vector<16x128xf32>
      tpu.vector_store %arg4[%c0_14, %c0_15], %20 {strides = array<i32>} : memref<16x128xf32, #tpu.memory_space<vmem>>, vector<16x128xf32>,
    } else {
    }
    return
  }
  func.func @transform_0(%arg0: i32, %arg1: i32) -> (i32, i32) {
    %c0_i32 = arith.constant 0 : i32
    %c0_i32_0 = arith.constant 0 : i32
    return %arg0, %c0_i32 : i32, i32
  }
  func.func @transform_1(%arg0: i32, %arg1: i32) -> (i32, i32) {
    %c0_i32 = arith.constant 0 : i32
    %c0_i32_0 = arith.constant 0 : i32
    return %c0_i32, %arg1 : i32, i32
  }
  func.func @transform_2(%arg0: i32, %arg1: i32) -> (i32, i32) {
    %c0_i32 = arith.constant 0 : i32
    %c0_i32_0 = arith.constant 0 : i32
    return %arg0, %c0_i32 : i32, i32
  }
}

</mosaic_0001>

<llo_original>
// kernel: tpu_custom_call.1
$region0: #{tpu_custom_call.1}
  #allocation0 [shape = 'u32[]', space=smem, size = 0x4, offset = 0x4, fixed_abs, tag = 'smem constant byte address 0x4 - core index']
  #allocation1 [shape = 'u32[144,128]{1,0:T(1,128)}', space=vmem, size = 0x12000, scoped, tag = 'internal scratch']
  #allocation2 [shape = 'f32[16,1]{1,0:T(8,128)}', space=vmem, size = 0x2000, scoped, tag = 'scratch operand']
  #allocation3 [shape = 'f32[16,1]{1,0:T(8,128)}', space=vmem, size = 0x2000, scoped, tag = 'scratch operand']
  %s0 = inlined_call_operand.hbm [shape: bf16[16,128], index: 0, kind: input, shape index: {}]
  %s1 = inlined_call_operand.hbm [shape: bf16[128,128], index: 1, kind: input, shape index: {}]
  %s2 = inlined_call_operand.hbm [shape: f32[16,128], index: 2, kind: output, shape index: {}]
  %s3 = sld [smem:[#allocation0]]
  $region38: #{tpu_custom_call.1} parent=0
    _
  %s5 = ssub.s32 1, %s3
  %s6 = scalar_select 0, %s5, %s3
  $region1: #{tpu_custom_call.1} parent=0
    #allocation4 [shape = 'u8[4096]{0}', space=vmem, size = 0x1000, scoped, tag = 'input window, operand 0, single buffered']
    #allocation5 [shape = 's32[1]{0}', space=sflag, size = 0x4, scoped, tag = 'scoped memory for tpu_custom_call.1']
    #allocation6 [shape = 's32[1]{0}', space=sflag, size = 0x4, scoped, tag = 'scoped memory for tpu_custom_call.1']
    #allocation7 [shape = 'u8[32768]{0}', space=vmem, size = 0x8000, scoped, tag = 'input window, operand 1, single buffered']
    #allocation8 [shape = 's32[1]{0}', space=sflag, size = 0x4, scoped, tag = 'scoped memory for tpu_custom_call.1']
    #allocation9 [shape = 'u8[8192]{0}', space=vmem, size = 0x2000, scoped, tag = 'output window, operand 0, single buffered']
    %7 = vsyncpa [#allocation5], 0
    %8 = vsyncpa [#allocation8], 0
    %9 = vsyncpa [#allocation6], 0
    // Predicated region
    $region2: #{tpu_custom_call.1} parent=1 // pred_check
      _
    $region3: #{tpu_custom_call.1} parent=1 // pred_check_branch
      %11 = sbr.rel (0) target = $region5
    $region4: #{tpu_custom_call.1} parent=1 // pred_region
      %s13 = ssub.s32 128, 128
      %14 = vsyncadd [#allocation5], %s13
      %s15 = sshll.u32 [#allocation4], 4
      %s16 = int_to_ptr.vmem [resolvable:$true] %s15
      %21 = dma.hbm_to_vmem [thread:$0]  %s0, 128, %s16, [#allocation5], 64, 64, 4
    $region5: #{tpu_custom_call.1} parent=1 // pred_fallthru
      _
    // Predicated region
    $region6: #{tpu_custom_call.1} parent=1 // pred_check
      _
    $region7: #{tpu_custom_call.1} parent=1 // pred_check_branch
      %23 = sbr.rel (0) target = $region9
    $region8: #{tpu_custom_call.1} parent=1 // pred_region
      %s25 = ssub.s32 1024, 1024
      %26 = vsyncadd [#allocation8], %s25
      %s27 = sshll.u32 [#allocation7], 4
      %s28 = int_to_ptr.vmem [resolvable:$true] %s27
      %33 = dma.hbm_to_vmem [thread:$0]  %s1, 1024, %s28, [#allocation8], 64, 64, 4
    $region9: #{tpu_custom_call.1} parent=1 // pred_fallthru
      _
    // Predicated region
    $region10: #{tpu_custom_call.1} parent=1 // pred_check
      _
    $region11: #{tpu_custom_call.1} parent=1 // pred_check_branch
      %35 = sbr.rel (0) target = $region13
    $region12: #{tpu_custom_call.1} parent=1 // pred_region
      %36 = dma.done [#allocation5], 128
    $region13: #{tpu_custom_call.1} parent=1 // pred_fallthru
      _
    // Predicated region
    $region14: #{tpu_custom_call.1} parent=1 // pred_check
      _
    $region15: #{tpu_custom_call.1} parent=1 // pred_check_branch
      %38 = sbr.rel (0) target = $region17
    $region16: #{tpu_custom_call.1} parent=1 // pred_region
      %39 = dma.done [#allocation8], 1024
    $region17: #{tpu_custom_call.1} parent=1 // pred_fallthru
      _
    %p41 = scmp.eq.s32.totalorder 0, 0
    // Predicated region
    $region18: #{tpu_custom_call.1} parent=1 // pred_check
      %p42 = pneg %p41
    $region19: #{tpu_custom_call.1} parent=1 // pred_check_branch
      %44 = sbr.rel (%p42) target = $region21
    $region20: #{tpu_custom_call.1} parent=1 // pred_region
      %vm45 = vcmask 7168
      %46 = vst.msk [vmem:[#allocation2] sm:$0xff] %vm45, -inf
      %47 = vst.msk [vmem:[#allocation2 + $0x8] sm:$0xff] %vm45, -inf
      %48 = vst.msk [vmem:[#allocation3] sm:$0xff] %vm45, 0.0
      %49 = vst.msk [vmem:[#allocation3 + $0x8] sm:$0xff] %vm45, 0.0
    $region21: #{tpu_custom_call.1} parent=1 // pred_fallthru
      _
    %v50 = vld [vmem:[#allocation4] sm:$0xf]
    %v51 = vld [vmem:[#allocation4 + $0x4] sm:$0xf]
    %v52 = vld [vmem:[#allocation7] sm:$0xf]
    %v53 = vld [vmem:[#allocation7 + $0x4] sm:$0xf]
    %v54 = vld [vmem:[#allocation7 + $0x8] sm:$0xf]
    %v55 = vld [vmem:[#allocation7 + $0xc] sm:$0xf]
    %v56 = vld [vmem:[#allocation7 + $0x10] sm:$0xf]
    %v57 = vld [vmem:[#allocation7 + $0x14] sm:$0xf]
    %v58 = vld [vmem:[#allocation7 + $0x18] sm:$0xf]
    %v59 = vld [vmem:[#allocation7 + $0x1c] sm:$0xf]
    %v60 = vld [vmem:[#allocation7 + $0x20] sm:$0xf]
    %v61 = vld [vmem:[#allocation7 + $0x24] sm:$0xf]
    %v62 = vld [vmem:[#allocation7 + $0x28] sm:$0xf]
    %v63 = vld [vmem:[#allocation7 + $0x2c] sm:$0xf]
    %v64 = vld [vmem:[#allocation7 + $0x30] sm:$0xf]
    %v65 = vld [vmem:[#allocation7 + $0x34] sm:$0xf]
    %v66 = vld [vmem:[#allocation7 + $0x38] sm:$0xf]
    %v67 = vld [vmem:[#allocation7 + $0x3c] sm:$0xf]
    %v70 = vunpack.c.l.b16 %v50
    %v71 = vunpack.c.l.b16 %v51
    %v72 = vpack.c.b16 %v71, %v70
    %v90 = vunpack.c.l.b16 %v52
    %v91 = vunpack.c.l.b16 %v53
    %v92 = vunpack.c.l.b16 %v54
    %v93 = vunpack.c.l.b16 %v55
    %v94 = vunpack.c.l.b16 %v56
    %v95 = vunpack.c.l.b16 %v57
    %v96 = vunpack.c.l.b16 %v58
    %v97 = vunpack.c.l.b16 %v59
    %v98 = vunpack.c.l.b16 %v60
    %v99 = vunpack.c.l.b16 %v61
    %v100 = vunpack.c.l.b16 %v62
    %v101 = vunpack.c.l.b16 %v63
    %v102 = vunpack.c.l.b16 %v64
    %v103 = vunpack.c.l.b16 %v65
    %v104 = vunpack.c.l.b16 %v66
    %v105 = vunpack.c.l.b16 %v67
    %v106 = vpack.c.b16 %v91, %v90
    %v107 = vpack.c.b16 %v93, %v92
    %v108 = vpack.c.b16 %v95, %v94
    %v109 = vpack.c.b16 %v97, %v96
    %v110 = vpack.c.b16 %v99, %v98
    %v111 = vpack.c.b16 %v101, %v100
    %v112 = vpack.c.b16 %v103, %v102
    %v113 = vpack.c.b16 %v105, %v104
    %122 = vmatprep.subr.bf16.mxu0 0
    %123 = vmatpush1.bf16.msra.mxu0 %v106
    %124 = vmatprep.subr.bf16.mxu0 0
    %125 = vmatpush1.bf16.msra.mxu0 %v107
    %126 = vmatprep.subr.bf16.mxu0 0
    %127 = vmatpush1.bf16.msra.mxu0 %v108
    %128 = vmatprep.subr.bf16.mxu0 0
    %129 = vmatpush1.bf16.msra.mxu0 %v109
    %130 = vmatprep.subr.bf16.mxu0 0
    %131 = vmatpush1.bf16.msra.mxu0 %v110
    %132 = vmatprep.subr.bf16.mxu0 0
    %133 = vmatpush1.bf16.msra.mxu0 %v111
    %134 = vmatprep.subr.bf16.mxu0 0
    %135 = vmatpush1.bf16.msra.mxu0 %v112
    %136 = vmatprep.subr.bf16.mxu0 0
    %137 = vmatpush1.bf16.msra.mxu0 %v113
    %138 = vmatprep.subr.bf16.mxu0 0
    %139 = vmatpush1.bf16.msra.mxu0 0
    %140 = vmatprep.subr.bf16.mxu0 0
    %141 = vmatpush1.bf16.msra.mxu0 0
    %142 = vmatprep.subr.bf16.mxu0 0
    %143 = vmatpush1.bf16.msra.mxu0 0
    %144 = vmatprep.subr.bf16.mxu0 0
    %145 = vmatpush1.bf16.msra.mxu0 0
    %146 = vmatprep.subr.bf16.mxu0 0
    %147 = vmatpush1.bf16.msra.mxu0 0
    %148 = vmatprep.subr.bf16.mxu0 0
    %149 = vmatpush1.bf16.msra.mxu0 0
    %150 = vmatprep.subr.bf16.mxu0 0
    %151 = vmatpush1.bf16.msra.mxu0 0
    %152 = vmatprep.subr.bf16.mxu0 0
    %153 = vmatpush1.bf16.msra.mxu0 0
    %154 = vmatprep.mubr.bf16.mxu0 0
    %155 = vmatmul.mubr.bf16.gmra.mrb[0].mxu0 %v72
    %v156 = vpop.f32.mrb[0].mxu0
    %v157 = vadd.f32 0.0, %v156
    %v158 = vpop.f32.mrb[0].mxu0
    %v159 = vpop.f32.mrb[0].mxu0
    %v160 = vadd.f32 0.0, %v159
    %v161 = vpop.f32.mrb[0].mxu0
    %162 = vdwg.mxu0
    %p163 = scmp.ne.s32.totalorder 0, 0
    // Predicated region
    $region22: #{tpu_custom_call.1} parent=1 // pred_check
      %p164 = pneg %p163
    $region23: #{tpu_custom_call.1} parent=1 // pred_check_branch
      %166 = sbr.rel (%p164) target = $region25
    $region24: #{tpu_custom_call.1} parent=1 // pred_region
      %v167 = vld [vmem:[#allocation2] sm:$0xff]
      %v168 = vld [vmem:[#allocation2 + $0x8] sm:$0xff]
      %169 = vmax.xlane.f32.xlu0 %v157
      %v170 = vpop.xlane.xlu0 %169
      %171 = vmax.xlane.f32.xlu0 %v160
      %v172 = vpop.xlane.xlu0 %171
      %v173 = vmax.f32 %v167, %v170
      %v174 = vmax.f32 %v168, %v172
      %v175 = vld [vmem:[#allocation3] sm:$0xff]
      %v176 = vld [vmem:[#allocation3 + $0x8] sm:$0xff]
      %v177 = vsub.f32 %v167, %v173
      %v178 = vsub.f32 %v168, %v174
      %v179 = vmul.f32 %v177, 1.442695
      %v180 = vpow.pop %v179
      %v181 = vmul.f32 %v178, 1.442695
      %v182 = vpow.pop %v181
      %v183 = vmul.f32 %v175, %v180
      %v184 = vmul.f32 %v176, %v182
      %186 = vset.pattern.permute.xlu0 0
      %187 = vperm.xlu0 %186, %v173
      %v188 = vpop.permute.xlu0 %187
      %191 = vset.pattern.permute.xlu0 0
      %192 = vperm.xlu0 %191, %v174
      %v193 = vpop.permute.xlu0 %192
      %v195 = vsub.f32 %v157, %v188
      %v196 = vsub.f32 %v160, %v193
      %v197 = vmul.f32 %v195, 1.442695
      %v198 = vpow.pop %v197
      %v199 = vmul.f32 %v196, 1.442695
      %v200 = vpow.pop %v199
      %201 = vadd.xlane.f32.xlu0 %v198
      %v202 = vpop.xlane.xlu0 %201
      %203 = vadd.xlane.f32.xlu0 %v200
      %v204 = vpop.xlane.xlu0 %203
      %v205 = vadd.f32 %v183, %v202
      %v206 = vadd.f32 %v184, %v204
      %vm207 = vcmask 7168
      %208 = vst.msk [vmem:[#allocation3] sm:$0xff] %vm207, %v205
      %209 = vst.msk [vmem:[#allocation3 + $0x8] sm:$0xff] %vm207, %v206
      %210 = vst.msk [vmem:[#allocation2] sm:$0xff] %vm207, %v173
      %211 = vst.msk [vmem:[#allocation2 + $0x8] sm:$0xff] %vm207, %v174
    $region25: #{tpu_custom_call.1} parent=1 // pred_fallthru
      _
    // Predicated region
    $region26: #{tpu_custom_call.1} parent=1 // pred_check
      %p212 = pneg %p41
    $region27: #{tpu_custom_call.1} parent=1 // pred_check_branch
      %214 = sbr.rel (%p212) target = $region29
    $region28: #{tpu_custom_call.1} parent=1 // pred_region
      %v215 = vlaneseq
      %v216 = vand.u32 %v215, 127
      %s217 = smul.u32 0, 128
      %v218 = vstv %s217
      %v219 = vadd.s32 %v216, %v218
      %vm220 = vcmp.lt.s32.totalorder %v219, 16
      %v221 = vsel %vm220, %v157, -inf
      %v222 = vsel %vm220, %v160, -inf
      %v223 = vld [vmem:[#allocation2] sm:$0xff]
      %v224 = vld [vmem:[#allocation2 + $0x8] sm:$0xff]
      %225 = vmax.xlane.f32.xlu0 %v221
      %v226 = vpop.xlane.xlu0 %225
      %227 = vmax.xlane.f32.xlu0 %v222
      %v228 = vpop.xlane.xlu0 %227
      %v229 = vmax.f32 %v223, %v226
      %v230 = vmax.f32 %v224, %v228
      %v231 = vld [vmem:[#allocation3] sm:$0xff]
      %v232 = vld [vmem:[#allocation3 + $0x8] sm:$0xff]
      %v233 = vsub.f32 %v223, %v229
      %v234 = vsub.f32 %v224, %v230
      %v235 = vmul.f32 %v233, 1.442695
      %v236 = vpow.pop %v235
      %v237 = vmul.f32 %v234, 1.442695
      %v238 = vpow.pop %v237
      %v239 = vmul.f32 %v231, %v236
      %v240 = vmul.f32 %v232, %v238
      %242 = vset.pattern.permute.xlu0 0
      %243 = vperm.xlu0 %242, %v229
      %v244 = vpop.permute.xlu0 %243
      %247 = vset.pattern.permute.xlu0 0
      %248 = vperm.xlu0 %247, %v230
      %v249 = vpop.permute.xlu0 %248
      %v251 = vsub.f32 %v221, %v244
      %v252 = vsub.f32 %v222, %v249
      %v253 = vmul.f32 %v251, 1.442695
      %v254 = vpow.pop %v253
      %v255 = vmul.f32 %v252, 1.442695
      %v256 = vpow.pop %v255
      %257 = vadd.xlane.f32.xlu0 %v254
      %v258 = vpop.xlane.xlu0 %257
      %259 = vadd.xlane.f32.xlu0 %v256
      %v260 = vpop.xlane.xlu0 %259
      %v261 = vadd.f32 %v239, %v258
      %v262 = vadd.f32 %v240, %v260
      %vm263 = vcmask 7168
      %264 = vst.msk [vmem:[#allocation3] sm:$0xff] %vm263, %v261
      %265 = vst.msk [vmem:[#allocation3 + $0x8] sm:$0xff] %vm263, %v262
      %266 = vst.msk [vmem:[#allocation2] sm:$0xff] %vm263, %v229
      %267 = vst.msk [vmem:[#allocation2 + $0x8] sm:$0xff] %vm263, %v230
      %v268 = vld [vmem:[#allocation2] sm:$0xff]
      %v269 = vld [vmem:[#allocation2 + $0x8] sm:$0xff]
      %v270 = vld [vmem:[#allocation3] sm:$0xff]
      %v271 = vld [vmem:[#allocation3 + $0x8] sm:$0xff]
      %v272 = vlog2.pop %v270
      %v273 = vmul.f32 %v272, 0.6931472
      %v274 = vlog2.pop %v271
      %v275 = vmul.f32 %v274, 0.6931472
      %v276 = vadd.f32 %v268, %v273
      %v277 = vadd.f32 %v269, %v275
      %279 = vset.pattern.permute.xlu0 0
      %280 = vperm.xlu0 %279, %v276
      %v281 = vpop.permute.xlu0 %280
      %284 = vset.pattern.permute.xlu0 0
      %285 = vperm.xlu0 %284, %v277
      %v286 = vpop.permute.xlu0 %285
      %288 = vst [vmem:[#allocation9] sm:$0xff] %v281
      %289 = vst [vmem:[#allocation9 + $0x8] sm:$0xff] %v286
    $region29: #{tpu_custom_call.1} parent=1 // pred_fallthru
      _
    // Predicated region
    $region30: #{tpu_custom_call.1} parent=1 // pred_check
      _
    $region31: #{tpu_custom_call.1} parent=1 // pred_check_branch
      %291 = sbr.rel (0) target = $region33
    $region32: #{tpu_custom_call.1} parent=1 // pred_region
      %s293 = ssub.s32 256, 256
      %294 = vsyncadd [#allocation6], %s293
      %s295 = sshll.u32 [#allocation9], 4
      %s296 = int_to_ptr.vmem [resolvable:$true] %s295
      %301 = dma.vmem_to_hbm [thread:$0]  %s296, 256, %s2, [#allocation6], 128, 128, 8
    $region33: #{tpu_custom_call.1} parent=1 // pred_fallthru
      _
    // Predicated region
    $region34: #{tpu_custom_call.1} parent=1 // pred_check
      _
    $region35: #{tpu_custom_call.1} parent=1 // pred_check_branch
      %303 = sbr.rel (0) target = $region37
    $region36: #{tpu_custom_call.1} parent=1 // pred_region
      %304 = dma.done [#allocation6], 256
    $region37: #{tpu_custom_call.1} parent=1 // pred_fallthru
      _
    %305 = vsyncpa [#allocation5], 1
    %306 = vsyncpa [#allocation8], 1
    %307 = vsyncpa [#allocation6], 1

</llo_original>
